<compile_context>
chip_gen: v7x
topology: tpu7x:2x2x1
jax: 0.10.0
libtpu: 0.0.40
codegen_flags: <defaults>
</compile_context>

<pallas_src>
from dataclasses import dataclass

import jax
import jax.numpy as jnp
from jax.experimental import pallas as pl
from jax.experimental.pallas import tpu as pltpu


@dataclass(frozen=True)
class SimpleGraph:
    """Minimal stand-in for a DGL-style graph (only num_nodes() is used)."""
    _num_nodes: int

    def num_nodes(self) -> int:
        return self._num_nodes


# Below this many bytes the fixed pallas_call overhead dominates a memcpy,
# so the wrapper returns x directly (still exact identity semantics).
_PALLAS_MIN_BYTES = 64 * 1024

# Per-stream tile budget.  With double buffering on both the input and the
# (aliased) output stream this keeps resident VMEM well under the 32 MiB
# scoped default and v7x's 64 MiB physical ceiling.
_TILE_BYTES_TARGET = 4 * 1024 * 1024


def _identity_kernel(x_ref, y_ref):
    # Identity pass-through of one (tile_n, feat) block of node features.
    y_ref[...] = x_ref[...]


def _pick_tile_n(n_nodes: int, feat: int, itemsize: int) -> int:
    """Largest multiple-of-8 row count whose tile fits the per-stream budget."""
    rows = _TILE_BYTES_TARGET // max(1, feat * itemsize)
    rows = max(8, min(rows, 2048))
    rows = (rows // 8) * 8
    if rows >= n_nodes:
        return n_nodes          # single full-extent block (always legal)
    return rows


def _identity_pool_pallas(x: jax.Array, tile_n: int) -> jax.Array:
    n_nodes, feat = x.shape
    grid = (pl.cdiv(n_nodes, tile_n),)
    return pl.pallas_call(
        _identity_kernel,
        grid=grid,
        # Lane-dense blocks: last dim is the full feature extent.
        in_specs=[pl.BlockSpec((tile_n, feat), lambda i: (i, 0))],
        out_specs=pl.BlockSpec((tile_n, feat), lambda i: (i, 0)),
        out_shape=jax.ShapeDtypeStruct((n_nodes, feat), x.dtype),
        # Output is an exact alias of the input: no second HBM allocation.
        input_output_aliases={0: 0},
        compiler_params=pltpu.CompilerParams(
            dimension_semantics=("parallel",),   # v7x: shard copy over 2 TCs
            vmem_limit_bytes=32 * 1024 * 1024,
        ),
    )(x)


def identity_pool(graph: SimpleGraph, x: jax.Array, *, tile_n=None):
    """Pallas implementation of IdentityPool.forward(graph, x)."""
    n_nodes, feat = x.shape
    # TODO(synk): torch.arange defaults to int64; int32 node ids only overflow
    # beyond 2**31 nodes, which is fine for any realistic graph on TPU.
    node_ids = jnp.arange(n_nodes, dtype=jnp.int32)

    nbytes = n_nodes * feat * x.dtype.itemsize
    if tile_n is None and nbytes < _PALLAS_MIN_BYTES:
        # Pure identity: nothing to compute, skip the kernel entirely.
        return graph, x, node_ids

    if tile_n is None:
        tile_n = _pick_tile_n(n_nodes, feat, x.dtype.itemsize)
    # (8, 128) rule: the row tile must be a multiple of 8 or the full extent.
    assert tile_n == n_nodes or tile_n % 8 == 0

    y = _identity_pool_pallas(x, tile_n)
    return graph, y, node_ids


if __name__ == "__main__":
    key = jax.random.PRNGKey(0)

    # --- Pallas path: small, but large enough to exercise the tiled kernel ---
    num_nodes, feat = 256, 128
    x = jax.random.normal(key, (num_nodes, feat), dtype=jnp.float32)
    graph = SimpleGraph(num_nodes)

    g_out, y, node_ids = identity_pool(graph, x, tile_n=64)   # grid = (4,)
    jax.block_until_ready((y, node_ids))

    assert g_out is graph
    assert y.shape == x.shape and y.dtype == x.dtype
    assert bool(jnp.all(y == x))
    assert node_ids.shape == (num_nodes,)
    assert node_ids.dtype == jnp.int32
    assert bool(jnp.all(node_ids == jnp.arange(num_nodes, dtype=jnp.int32)))

    # --- Single full-extent block path (auto tile selection) ---
    x_mid = jax.random.normal(jax.random.PRNGKey(2), (128, 256), jnp.float32)
    g_mid = SimpleGraph(128)
    g_m, y_mid, ids_mid = identity_pool(g_mid, x_mid, tile_n=128)  # grid = (1,)
    jax.block_until_ready((y_mid, ids_mid))
    assert g_m is g_mid
    assert bool(jnp.all(y_mid == x_mid))
    assert bool(jnp.all(ids_mid == jnp.arange(128, dtype=jnp.int32)))

    # --- Tiny-shape fast path (bypasses Pallas, pure identity) ---
    x_small = jax.random.normal(jax.random.PRNGKey(1), (16, 32), jnp.float32)
    g_small = SimpleGraph(16)
    g_o, y_small, ids_small = identity_pool(g_small, x_small)
    jax.block_until_ready((y_small, ids_small))
    assert g_o is g_small
    assert y_small is x_small   # no copy at all on the fast path
    assert bool(jnp.all(ids_small == jnp.arange(16, dtype=jnp.int32)))

    print("KERNEL_OK")
</pallas_src>

<mosaic_0001>
module attributes {stable_mosaic.version = 11 : i64} {
  func.func @_identity_kernel(%arg0: i32, %arg1: memref<64x128xf32, #tpu.memory_space<vmem>>, %arg2: memref<64x128xf32, #tpu.memory_space<vmem>>) attributes {dimension_semantics = [#tpu.dimension_semantics<parallel>], iteration_bounds = array<i64: 4>, scalar_prefetch = 0 : i64, scratch_operands = 0 : i64, tpu.core_type = #tpu.core_type<tc>, window_params = [{transform_indices = @transform_0, window_bounds = array<i64: 64, 128>}, {transform_indices = @transform_1, window_bounds = array<i64: 64, 128>}]} {
    %c0 = arith.constant 0 : index
    %c0_0 = arith.constant 0 : index
    %0 = vector.load %arg1[%c0, %c0_0] : memref<64x128xf32, #tpu.memory_space<vmem>>, vector<64x128xf32>
    %c0_1 = arith.constant 0 : index
    %c0_2 = arith.constant 0 : index
    %1 = vector.load %arg2[%c0_1, %c0_2] : memref<64x128xf32, #tpu.memory_space<vmem>>, vector<64x128xf32>
    tpu.vector_store %arg2[%c0_1, %c0_2], %0 {strides = array<i32>} : memref<64x128xf32, #tpu.memory_space<vmem>>, vector<64x128xf32>,
    return
  }
  func.func @transform_0(%arg0: i32) -> (i32, i32) {
    %c0_i32 = arith.constant 0 : i32
    %c0_i32_0 = arith.constant 0 : i32
    return %arg0, %c0_i32 : i32, i32
  }
  func.func @transform_1(%arg0: i32) -> (i32, i32) {
    %c0_i32 = arith.constant 0 : i32
    %c0_i32_0 = arith.constant 0 : i32
    return %arg0, %c0_i32 : i32, i32
  }
}

</mosaic_0001>

<llo_original>
// kernel: tpu_custom_call.1
$region0: #{tpu_custom_call.1}
  #allocation0 [shape = 'u32[]', space=smem, size = 0x4, offset = 0x4, fixed_abs, tag = 'smem constant byte address 0x4 - core index']
  #allocation1 [shape = 'u32[144,128]{1,0:T(1,128)}', space=vmem, size = 0x12000, scoped, tag = 'internal scratch']
  %s0 = inlined_call_operand.hbm [shape: f32[256,128], index: 0, kind: input, shape index: {}, may-alias: {0,1}]
  %s1 = inlined_call_operand.hbm [shape: f32[256,128], index: 1, kind: output, shape index: {}, may-alias: {0,1}]
  %s2 = sld [smem:[#allocation0]]
  $region41: #{tpu_custom_call.1} parent=0
    _
  %s4 = ssub.s32 1, %s2
  %s5 = scalar_select 0, %s4, %s2
  $region1: #{tpu_custom_call.1} parent=0
    #allocation2 [shape = 'u8[65536]{0}', space=vmem, size = 0x10000, scoped, tag = 'input window, operand 0']
    #allocation3 [shape = 's32[2]{0}', space=sflag, size = 0x8, scoped, tag = 'scoped memory for tpu_custom_call.1']
    #allocation4 [shape = 's32[2]{0}', space=sflag, size = 0x8, scoped, tag = 'scoped memory for tpu_custom_call.1']
    #allocation5 [shape = 'u8[65536]{0}', space=vmem, size = 0x10000, scoped, tag = 'output window, operand 0']
    %6 = vsyncpa [#allocation3], 0
    %s7 = scalar_lea.sflag [#allocation3], 1
    %8 = vsyncpa %s7, 0
    %9 = vsyncpa [#allocation4], 0
    %s10 = scalar_lea.sflag [#allocation4], 1
    %11 = vsyncpa %s10, 0
    loop: start=0, step=1, limit=6
    $region2: #{tpu_custom_call.1} parent=1 // loop_pre_header
      _
    $region3: #{tpu_custom_call.1} parent=1 // loop_header
      %s13 = sphi 0, %s17
      %p14 = scmp.ge.s32.totalorder %s13, 6
      %s23 = sphi 0, %s25
      %s26 = sphi 0, %s23
      %s27 = sphi 0, %s26
      %s43 = sphi 0, %s27
      %s49 = sphi 0, %s51
      %s52 = sphi 0, %s49
      %s53 = sphi 0, %s52
      %s69 = sphi 0, %s53
    $region4: #{tpu_custom_call.1} parent=1 // loop_header_branch
      %16 = sbr.rel (%p14) target = $region8
    $region5: #{tpu_custom_call.1} parent=1 // loop_body
      %s18 = ssub.s32 %s13, 1
      %s19 = ssub.s32 %s13, 2
      %s20 = sadd.s32 %s13, 1
      %s21 = ssub.s32 %s13, %s20
      %p22 = scmp.eq.s32.totalorder %s21, 0
      %s24 = sadd.s32 %s23, 1
      %s25 = scalar_select %p22, %s23, %s24
      %p28 = pneg %p22
      %p29 = scmp.eq.s32.totalorder %s13, 3
      %p30 = por %p28, %p29
      %p31 = scmp.ne.s32.totalorder %s23, %s26
      %p32 = scmp.eq.s32.totalorder %s13, 0
      %p33 = por %p31, %p32
      %p34 = scmp.ne.s32.totalorder %s23, %s26
      %p35 = scmp.eq.s32.totalorder %s18, 3
      %p36 = por %p34, %p35
      %p37 = scmp.ne.s32.totalorder %s26, %s27
      %p38 = scmp.eq.s32.totalorder %s18, 0
      %p39 = por %p37, %p38
      %p40 = scmp.ne.s32.totalorder %s26, %s27
      %p41 = scmp.eq.s32.totalorder %s19, 3
      %p42 = por %p40, %p41
      %p44 = scmp.ne.s32.totalorder %s27, %s43
      %p45 = scmp.eq.s32.totalorder %s19, 0
      %p46 = por %p44, %p45
      %s47 = ssub.s32 %s13, %s20
      %p48 = scmp.eq.s32.totalorder %s47, 0
      %s50 = sadd.s32 %s49, 1
      %s51 = scalar_select %p48, %s49, %s50
      %p54 = pneg %p48
      %p55 = scmp.eq.s32.totalorder %s13, 3
      %p56 = por %p54, %p55
      %p57 = scmp.ne.s32.totalorder %s49, %s52
      %p58 = scmp.eq.s32.totalorder %s13, 0
      %p59 = por %p57, %p58
      %p60 = scmp.ne.s32.totalorder %s49, %s52
      %p61 = scmp.eq.s32.totalorder %s18, 3
      %p62 = por %p60, %p61
      %p63 = scmp.ne.s32.totalorder %s52, %s53
      %p64 = scmp.eq.s32.totalorder %s18, 0
      %p65 = por %p63, %p64
      %p66 = scmp.ne.s32.totalorder %s52, %s53
      %p67 = scmp.eq.s32.totalorder %s19, 3
      %p68 = por %p66, %p67
      %p70 = scmp.ne.s32.totalorder %s53, %s69
      %p71 = scmp.eq.s32.totalorder %s19, 0
      %p72 = por %p70, %p71
      %p73 = scmp.le.s32.totalorder 1, %s13
      %p74 = scmp.lt.s32.totalorder %s13, 5
      %p75 = pnand %p73, %p74
      %p76 = pneg %p75
      // Predicated region
      $region9: #{tpu_custom_call.1} parent=5 // pred_check
        _
      $region10: #{tpu_custom_call.1} parent=5 // pred_check_branch
        %78 = sbr.rel (%p75) target = $region12
      $region11: #{tpu_custom_call.1} parent=5 // pred_region
        %s79 = ssub.s32 %s13, 1
      $region12: #{tpu_custom_call.1} parent=5 // pred_fallthru
        _
      %p80 = scmp.lt.s32.totalorder %s13, 4
      // Predicated region
      $region13: #{tpu_custom_call.1} parent=5 // pred_check
        %p81 = pneg %p80
      $region14: #{tpu_custom_call.1} parent=5 // pred_check_branch
        %83 = sbr.rel (%p81) target = $region16
      $region15: #{tpu_custom_call.1} parent=5 // pred_region
        // Predicated region
        $region17: #{tpu_custom_call.1} parent=15 // pred_check
          %p84 = pneg %p33
        $region18: #{tpu_custom_call.1} parent=15 // pred_check_branch
          %86 = sbr.rel (%p84) target = $region20
        $region19: #{tpu_custom_call.1} parent=15 // pred_region
          %s87 = sand.u32 %s23, 1
          %s88 = scalar_lea.sflag [#allocation3], %s87
          %s89 = sand.u32 %s23, 1
          %s90 = smul.addr %s89, 64
          %s91 = scalar_lea.vmem [#allocation2], %s90
          %s92 = smul.u32 8, %s13
          %s94 = ssub.s32 1024, 1024
          %95 = vsyncadd %s88, %s94
          %s96 = smul.addr %s92, 128
          %s97 = scalar_lea.hbm %s0, %s96
          %s98 = sshll.u32 %s91, 4
          %s99 = int_to_ptr.vmem [resolvable:$true] %s98
          %104 = dma.hbm_to_vmem [thread:$0]  %s97, 1024, %s99, %s88, 128, 128, 8
        $region20: #{tpu_custom_call.1} parent=15 // pred_fallthru
          _
      $region16: #{tpu_custom_call.1} parent=5 // pred_fallthru
        _
      %p105 = scmp.le.s32.totalorder 1, %s13
      %p106 = scmp.lt.s32.totalorder %s13, 5
      %p107 = pnand %p105, %p106
      %p108 = pneg %p107
      // Predicated region
      $region21: #{tpu_custom_call.1} parent=5 // pred_check
        _
      $region22: #{tpu_custom_call.1} parent=5 // pred_check_branch
        %110 = sbr.rel (%p107) target = $region24
      $region23: #{tpu_custom_call.1} parent=5 // pred_region
        %s111 = ssub.s32 %s13, 1
        %s112 = sand.u32 %s26, 1
        %s113 = scalar_lea.sflag [#allocation3], %s112
        %s114 = sand.u32 %s26, 1
        %s115 = smul.addr %s114, 64
        %s116 = scalar_lea.vmem [#allocation2], %s115
        // Predicated region
        $region25: #{tpu_custom_call.1} parent=23 // pred_check
          %p117 = pneg %p39
        $region26: #{tpu_custom_call.1} parent=23 // pred_check_branch
          %119 = sbr.rel (%p117) target = $region28
        $region27: #{tpu_custom_call.1} parent=23 // pred_region
          %120 = dma.done %s113, 1024
        $region28: #{tpu_custom_call.1} parent=23 // pred_fallthru
          _
        %s121 = sand.u32 %s26, 1
        %s122 = scalar_lea.sflag [#allocation3], %s121
        %s123 = sand.u32 %s26, 1
        %s124 = smul.addr %s123, 64
        %s125 = scalar_lea.vmem [#allocation2], %s124
        %p126 = pneg %p39
        %p127 = pneg %p36
        %p128 = pneg %p65
        %p129 = pneg %p62
        %s130 = sand.u32 %s52, 1
        %s131 = scalar_lea.sflag [#allocation4], %s130
        %s132 = sand.u32 %s52, 1
        %s133 = smul.addr %s132, 64
        %s134 = scalar_lea.vmem [#allocation5], %s133
        %s135 = smul.u32 8, %s18
        %s136 = smul.u32 8, %s18
        %v137 = vld [vmem:[%s116] sm:$0xff]
        %v138 = vld [vmem:[%s116 + $0x8] sm:$0xff]
        %v139 = vld [vmem:[%s116 + $0x10] sm:$0xff]
        %v140 = vld [vmem:[%s116 + $0x18] sm:$0xff]
        %v141 = vld [vmem:[%s116 + $0x20] sm:$0xff]
        %v142 = vld [vmem:[%s116 + $0x28] sm:$0xff]
        %v143 = vld [vmem:[%s116 + $0x30] sm:$0xff]
        %v144 = vld [vmem:[%s116 + $0x38] sm:$0xff]
        %145 = vst [vmem:[%s134] sm:$0xff] %v137
        %146 = vst [vmem:[%s134 + $0x8] sm:$0xff] %v138
        %147 = vst [vmem:[%s134 + $0x10] sm:$0xff] %v139
        %148 = vst [vmem:[%s134 + $0x18] sm:$0xff] %v140
        %149 = vst [vmem:[%s134 + $0x20] sm:$0xff] %v141
        %150 = vst [vmem:[%s134 + $0x28] sm:$0xff] %v142
        %151 = vst [vmem:[%s134 + $0x30] sm:$0xff] %v143
        %152 = vst [vmem:[%s134 + $0x38] sm:$0xff] %v144
        %s153 = sand.u32 %s52, 1
        %s154 = scalar_lea.sflag [#allocation4], %s153
        %s155 = sand.u32 %s52, 1
        %s156 = smul.addr %s155, 64
        %s157 = scalar_lea.vmem [#allocation5], %s156
        // Predicated region
        $region29: #{tpu_custom_call.1} parent=23 // pred_check
          %p158 = pneg %p62
        $region30: #{tpu_custom_call.1} parent=23 // pred_check_branch
          %160 = sbr.rel (%p158) target = $region32
        $region31: #{tpu_custom_call.1} parent=23 // pred_region
          %s161 = smul.u32 8, %s18
          %s163 = ssub.s32 1024, 1024
          %164 = vsyncadd %s154, %s163
          %s165 = smul.addr %s161, 128
          %s166 = scalar_lea.hbm %s1, %s165
          %s167 = sshll.u32 %s157, 4
          %s168 = int_to_ptr.vmem [resolvable:$true] %s167
          %173 = dma.vmem_to_hbm [thread:$0]  %s168, 1024, %s166, %s154, 128, 128, 8
        $region32: #{tpu_custom_call.1} parent=23 // pred_fallthru
          _
      $region24: #{tpu_custom_call.1} parent=5 // pred_fallthru
        _
      %p174 = scmp.le.s32.totalorder 2, %s13
      // Predicated region
      $region33: #{tpu_custom_call.1} parent=5 // pred_check
        %p175 = pneg %p174
      $region34: #{tpu_custom_call.1} parent=5 // pred_check_branch
        %177 = sbr.rel (%p175) target = $region36
      $region35: #{tpu_custom_call.1} parent=5 // pred_region
        %s178 = ssub.s32 %s13, 2
        // Predicated region
        $region37: #{tpu_custom_call.1} parent=35 // pred_check
          %p179 = pneg %p68
        $region38: #{tpu_custom_call.1} parent=35 // pred_check_branch
          %181 = sbr.rel (%p179) target = $region40
        $region39: #{tpu_custom_call.1} parent=35 // pred_region
          %s182 = sand.u32 %s53, 1
          %s183 = scalar_lea.sflag [#allocation4], %s182
          %s184 = sand.u32 %s53, 1
          %s185 = smul.addr %s184, 64
          %s186 = scalar_lea.vmem [#allocation5], %s185
          %187 = dma.done %s183, 1024
        $region40: #{tpu_custom_call.1} parent=35 // pred_fallthru
          _
      $region36: #{tpu_custom_call.1} parent=5 // pred_fallthru
        _
    $region6: #{tpu_custom_call.1} parent=1 // loop_footer
      %s17 = sadd.s32 1, %s13
    $region7: #{tpu_custom_call.1} parent=1 // loop_footer_branch
      %12 = sbr.rel target = $region3
    $region8: #{tpu_custom_call.1} parent=1 // loop_exit
      _
    %188 = vsyncpa [#allocation3], 1
    %s189 = scalar_lea.sflag [#allocation3], 1
    %190 = vsyncpa %s189, 1
    %191 = vsyncpa [#allocation4], 1
    %s192 = scalar_lea.sflag [#allocation4], 1
    %193 = vsyncpa %s192, 1

</llo_original>
